<compile_context>
chip_gen: v5e
topology: v5e:2x2
jax: 0.10.0
libtpu: 0.0.40
codegen_flags: <defaults>
</compile_context>

<pallas_src>
import jax
import jax.numpy as jnp
from jax.experimental import pallas as pl
from jax.experimental.pallas import tpu as pltpu

N_PAD = 128          # lane-dense padded output width (real outputs = 2)
TB_DEFAULT = 512     # batch tile (multiple of 8); 512*H*4B double-buffered
                     # stays far below v7x's reduced VMEM budget for BERT H.


def _nsp_head_kernel(x_ref, w_ref, b_ref, o_ref):
    # x_ref: (TB, H) VMEM, w_ref: (H, 128) VMEM, b_ref: (1, 128) f32 VMEM,
    # o_ref: (TB, 128) VMEM (lane-dense -> unmasked stores).
    acc = jnp.dot(x_ref[...], w_ref[...], preferred_element_type=jnp.float32)
    o_ref[...] = (acc + b_ref[...]).astype(o_ref.dtype)


def prepare_nsp_params(weight, bias, param_dtype=None):
    """One-time parameter prep (call at init, NOT per forward).

    weight: (2, H) PyTorch layout; bias: (2,).
    Returns (w_padded (H, 128), b_padded (1, 128) f32).
    """
    out_features, H = weight.shape
    assert out_features == 2
    w_dtype = param_dtype if param_dtype is not None else weight.dtype
    w_padded = jnp.zeros((H, N_PAD), dtype=w_dtype)
    w_padded = w_padded.at[:, :out_features].set(weight.T.astype(w_dtype))
    # Bias kept in f32: elementwise add stays on the f32 VPU path (v5e has no
    # bf16 VALU); it is added to the f32 accumulator before the downcast.
    b_padded = jnp.zeros((1, N_PAD), dtype=jnp.float32)
    b_padded = b_padded.at[:, :out_features].set(bias.astype(jnp.float32))
    return w_padded, b_padded


def nsp_head(pooled_output, w_padded, b_padded, *, tb=TB_DEFAULT):
    """pooled_output: (B, H); w_padded: (H, 128); b_padded: (1, 128) f32.

    Returns (B, 2) seq_relationship_score in pooled_output.dtype.
    """
    B, H = pooled_output.shape
    assert w_padded.shape == (H, N_PAD)
    assert b_padded.shape == (1, N_PAD)

    if B <= tb:
        # Single full-extent block (satisfies the block-shape rule for any B).
        tb_eff = B
        b_pad = B
        x = pooled_output
    else:
        # Tile the batch; pad B up to a multiple of TB (rows are independent,
        # padded rows are sliced off below).
        tb_eff = tb
        b_pad = pl.cdiv(B, tb) * tb
        x = pooled_output
        if b_pad != B:
            x = jnp.pad(pooled_output, ((0, b_pad - B), (0, 0)))

    grid = (b_pad // tb_eff,)

    out_padded = pl.pallas_call(
        _nsp_head_kernel,
        out_shape=jax.ShapeDtypeStruct((b_pad, N_PAD), pooled_output.dtype),
        grid_spec=pltpu.PrefetchScalarGridSpec(
            num_scalar_prefetch=0,
            grid=grid,
            in_specs=[
                pl.BlockSpec((tb_eff, H), lambda i: (i, 0)),   # streamed x
                pl.BlockSpec((H, N_PAD), lambda i: (0, 0)),    # resident W
                pl.BlockSpec((1, N_PAD), lambda i: (0, 0)),    # resident bias
            ],
            out_specs=pl.BlockSpec((tb_eff, N_PAD), lambda i: (i, 0)),
        ),
        compiler_params=pltpu.CompilerParams(
            # Independent batch tiles: lets v7x shard across its 2 TCs.
            dimension_semantics=("parallel",),
        ),
    )(x, w_padded, b_padded)

    # Strip batch padding and the lane padding of the output.
    return out_padded[:B, :2]


if __name__ == "__main__":
    # Small shapes consistent with the module: batch=2, hidden=32.
    B, H = 2, 32
    key = jax.random.PRNGKey(0)
    k_x, k_w, k_b = jax.random.split(key, 3)

    pooled_output = jax.random.normal(k_x, (B, H), dtype=jnp.float32)
    # Deterministic "Linear(hidden_size, 2)" parameters (PyTorch-style shapes).
    weight = jax.random.normal(k_w, (2, H), dtype=jnp.float32) * 0.02
    bias = jax.random.normal(k_b, (2,), dtype=jnp.float32) * 0.02

    # One-time parameter prep (hoisted out of the per-call path).
    w_padded, b_padded = prepare_nsp_params(weight, bias)

    out = nsp_head(pooled_output, w_padded, b_padded)
    out = jax.block_until_ready(out)

    # Reference check (plain JAX) for correctness.
    ref = pooled_output @ weight.T + bias
    assert out.shape == (B, 2)
    assert jnp.allclose(out, ref, atol=1e-5, rtol=1e-5)

    print("KERNEL_OK")
</pallas_src>

<mosaic_0001>
module attributes {stable_mosaic.version = 11 : i64} {
  func.func @_nsp_head_kernel(%arg0: i32, %arg1: memref<2x32xf32, #tpu.memory_space<vmem>>, %arg2: memref<32x128xf32, #tpu.memory_space<vmem>>, %arg3: memref<1x128xf32, #tpu.memory_space<vmem>>, %arg4: memref<2x128xf32, #tpu.memory_space<vmem>>) attributes {dimension_semantics = [#tpu.dimension_semantics<parallel>], iteration_bounds = array<i64: 1>, scalar_prefetch = 0 : i64, scratch_operands = 0 : i64, tpu.core_type = #tpu.core_type<tc>, window_params = [{transform_indices = @transform_0, window_bounds = array<i64: 2, 32>}, {pipeline_mode = #tpu.pipeline_mode<synchronous>, transform_indices = @transform_1, window_bounds = array<i64: 32, 128>}, {pipeline_mode = #tpu.pipeline_mode<synchronous>, transform_indices = @transform_2, window_bounds = array<i64: 1, 128>}, {transform_indices = @transform_3, window_bounds = array<i64: 2, 128>}]} {
    %c0 = arith.constant 0 : index
    %c0_0 = arith.constant 0 : index
    %0 = vector.load %arg1[%c0, %c0_0] : memref<2x32xf32, #tpu.memory_space<vmem>>, vector<2x32xf32>
    %c0_1 = arith.constant 0 : index
    %c0_2 = arith.constant 0 : index
    %1 = vector.load %arg2[%c0_1, %c0_2] : memref<32x128xf32, #tpu.memory_space<vmem>>, vector<32x128xf32>
    %cst = arith.constant dense<0.000000e+00> : vector<2x128xf32>
    %2 = tpu.matmul %0, %1, %cst {dimension_numbers = #tpu.dot_dimension_numbers<[1], [0], [0], [1], [0, 0, 1, 1], [], []>} : vector<2x32xf32>, vector<32x128xf32>, vector<2x128xf32> -> vector<2x128xf32>
    %c0_3 = arith.constant 0 : index
    %c0_4 = arith.constant 0 : index
    %3 = vector.load %arg3[%c0_3, %c0_4] : memref<1x128xf32, #tpu.memory_space<vmem>>, vector<1x128xf32>
    %4 = vector.broadcast %3 : vector<1x128xf32> to vector<2x128xf32>
    %5 = arith.addf %2, %4 : vector<2x128xf32>
    %c0_5 = arith.constant 0 : index
    %c0_6 = arith.constant 0 : index
    %6 = vector.load %arg4[%c0_5, %c0_6] : memref<2x128xf32, #tpu.memory_space<vmem>>, vector<2x128xf32>
    tpu.vector_store %arg4[%c0_5, %c0_6], %5 {strides = array<i32>} : memref<2x128xf32, #tpu.memory_space<vmem>>, vector<2x128xf32>,
    return
  }
  func.func @transform_0(%arg0: i32) -> (i32, i32) {
    %c0_i32 = arith.constant 0 : i32
    %c0_i32_0 = arith.constant 0 : i32
    return %arg0, %c0_i32 : i32, i32
  }
  func.func @transform_1(%arg0: i32) -> (i32, i32) {
    %c0_i32 = arith.constant 0 : i32
    %c0_i32_0 = arith.constant 0 : i32
    %c0_i32_1 = arith.constant 0 : i32
    return %c0_i32, %c0_i32_0 : i32, i32
  }
  func.func @transform_2(%arg0: i32) -> (i32, i32) {
    %c0_i32 = arith.constant 0 : i32
    %c0_i32_0 = arith.constant 0 : i32
    %c0_i32_1 = arith.constant 0 : i32
    return %c0_i32, %c0_i32_0 : i32, i32
  }
  func.func @transform_3(%arg0: i32) -> (i32, i32) {
    %c0_i32 = arith.constant 0 : i32
    %c0_i32_0 = arith.constant 0 : i32
    return %arg0, %c0_i32 : i32, i32
  }
}

</mosaic_0001>

<llo_original>
// kernel: tpu_custom_call.1
$region0: #{tpu_custom_call.1}
  #allocation0 [shape = 'u32[]', space=smem, size = 0x4, offset = 0x4, fixed_abs, tag = 'smem constant byte address 0x4 - core index']
  #allocation1 [shape = 'u32[72,128]{1,0:T(1,128)}', space=vmem, size = 0x9000, scoped, tag = 'internal scratch']
  %s0 = inlined_call_operand.hbm [shape: f32[2,32], index: 0, kind: input, shape index: {}]
  %s1 = inlined_call_operand.hbm [shape: f32[32,128], index: 1, kind: input, shape index: {}]
  %s2 = inlined_call_operand.vmem [shape: f32[1,128], index: 2, kind: input, shape index: {}]
  %s3 = inlined_call_operand.hbm [shape: f32[2,128], index: 3, kind: output, shape index: {}]
  %s4 = sld [smem:[#allocation0]]
  $region30: #{tpu_custom_call.1} parent=0
    _
  %s6 = ssub.s32 1, %s4
  %s7 = scalar_select 0, %s6, %s4
  $region1: #{tpu_custom_call.1} parent=0
    #allocation2 [shape = 'u8[1024]{0}', space=vmem, size = 0x400, scoped, tag = 'input window, operand 0, single buffered']
    #allocation3 [shape = 's32[1]{0}', space=sflag, size = 0x4, scoped, tag = 'scoped memory for tpu_custom_call.1']
    #allocation4 [shape = 's32[1]{0}', space=sflag, size = 0x4, scoped, tag = 'scoped memory for tpu_custom_call.1']
    #allocation5 [shape = 'u8[16384]{0}', space=vmem, size = 0x4000, scoped, tag = 'input window, operand 1, single buffered']
    #allocation6 [shape = 's32[1]{0}', space=sflag, size = 0x4, scoped, tag = 'scoped memory for tpu_custom_call.1']
    #allocation7 [shape = 'u8[1024]{0}', space=vmem, size = 0x400, scoped, tag = 'output window, operand 0, single buffered']
    %8 = vsyncpa [#allocation3], 0
    %9 = vsyncpa [#allocation6], 0
    %10 = vsyncpa [#allocation4], 0
    // Predicated region
    $region2: #{tpu_custom_call.1} parent=1 // pred_check
      _
    $region3: #{tpu_custom_call.1} parent=1 // pred_check_branch
      %12 = sbr.rel (0) target = $region5
    $region4: #{tpu_custom_call.1} parent=1 // pred_region
      %14 = vsyncadd [#allocation3], 0
      %s16 = sshll.u32 %s0, 4
      %s17 = int_to_ptr.hbm [resolvable:$true] %s16
      %s18 = sshll.u32 [#allocation2], 4
      %s19 = int_to_ptr.vmem [resolvable:$true] %s18
      %21 = dma.hbm_to_vmem [thread:$0]  %s17, 32, %s19, [#allocation3]
    $region5: #{tpu_custom_call.1} parent=1 // pred_fallthru
      _
    // Predicated region
    $region6: #{tpu_custom_call.1} parent=1 // pred_check
      _
    $region7: #{tpu_custom_call.1} parent=1 // pred_check_branch
      %23 = sbr.rel (0) target = $region9
    $region8: #{tpu_custom_call.1} parent=1 // pred_region
      %25 = vsyncadd [#allocation6], 0
      %s26 = sshll.u32 %s1, 4
      %s27 = int_to_ptr.hbm [resolvable:$true] %s26
      %s28 = sshll.u32 [#allocation5], 4
      %s29 = int_to_ptr.vmem [resolvable:$true] %s28
      %34 = dma.hbm_to_vmem [thread:$0]  %s27, 512, %s29, [#allocation6], 128, 128, 8
    $region9: #{tpu_custom_call.1} parent=1 // pred_fallthru
      _
    // Predicated region
    $region10: #{tpu_custom_call.1} parent=1 // pred_check
      _
    $region11: #{tpu_custom_call.1} parent=1 // pred_check_branch
      %36 = sbr.rel (0) target = $region13
    $region12: #{tpu_custom_call.1} parent=1 // pred_region
      _
    $region13: #{tpu_custom_call.1} parent=1 // pred_fallthru
      _
    // Predicated region
    $region14: #{tpu_custom_call.1} parent=1 // pred_check
      _
    $region15: #{tpu_custom_call.1} parent=1 // pred_check_branch
      %38 = sbr.rel (0) target = $region17
    $region16: #{tpu_custom_call.1} parent=1 // pred_region
      %40 = dma.done [#allocation3], 32
    $region17: #{tpu_custom_call.1} parent=1 // pred_fallthru
      _
    // Predicated region
    $region18: #{tpu_custom_call.1} parent=1 // pred_check
      _
    $region19: #{tpu_custom_call.1} parent=1 // pred_check_branch
      %42 = sbr.rel (0) target = $region21
    $region20: #{tpu_custom_call.1} parent=1 // pred_region
      %44 = dma.done [#allocation6], 512
    $region21: #{tpu_custom_call.1} parent=1 // pred_fallthru
      _
    %v45 = vld [vmem:[#allocation2] sm:$0x3]
    %v46 = vld [vmem:[#allocation5] sm:$0xff]
    %v47 = vld [vmem:[#allocation5 + $0x8] sm:$0xff]
    %v48 = vld [vmem:[#allocation5 + $0x10] sm:$0xff]
    %v49 = vld [vmem:[#allocation5 + $0x18] sm:$0xff]
    %v50 = vld [vmem:[%s2] sm:$0x1]
    %v52 = vperm.slane %v50, 0
    %vm54 = vcmask 261120
    %v56 = vsel %vm54, %v45, 0
    %58 = vmatpush.msra.mxu0 0.0
    %59 = vmatpush.msra.mxu0 0.0
    %60 = vmatpush.msra.mxu0 0.0
    %61 = vmatpush.msra.mxu0 0.0
    %62 = vmatpush.msra.mxu0 0.0
    %63 = vmatpush.msra.mxu0 0.0
    %64 = vmatpush.msra.mxu0 0.0
    %65 = vmatpush.msra.mxu0 0.0
    %66 = vmatpush.msra.mxu0 0.0
    %67 = vmatpush.msra.mxu0 0.0
    %68 = vmatpush.msra.mxu0 0.0
    %69 = vmatpush.msra.mxu0 0.0
    %70 = vmatpush.msra.mxu0 %v49
    %71 = vmatpush.msra.mxu0 %v48
    %72 = vmatpush.msra.mxu0 %v47
    %73 = vmatpush.msra.mxu0 %v46
    %74 = vmatmul.f32.gmra.mxu0 %v56
    %v75 = vpop.f32.mrf.mxu0
    %v76 = vadd.f32 %v52, %v75
    %77 = vdwg.mxu0
    %78 = vst [vmem:[#allocation7] sm:$0x3] %v76
    // Predicated region
    $region22: #{tpu_custom_call.1} parent=1 // pred_check
      _
    $region23: #{tpu_custom_call.1} parent=1 // pred_check_branch
      %80 = sbr.rel (0) target = $region25
    $region24: #{tpu_custom_call.1} parent=1 // pred_region
      %82 = vsyncadd [#allocation4], 0
      %s84 = sshll.u32 [#allocation7], 4
      %s85 = int_to_ptr.vmem [resolvable:$true] %s84
      %s86 = sshll.u32 %s3, 4
      %s87 = int_to_ptr.hbm [resolvable:$true] %s86
      %89 = dma.vmem_to_hbm [thread:$0]  %s85, 32, %s87, [#allocation4]
    $region25: #{tpu_custom_call.1} parent=1 // pred_fallthru
      _
    // Predicated region
    $region26: #{tpu_custom_call.1} parent=1 // pred_check
      _
    $region27: #{tpu_custom_call.1} parent=1 // pred_check_branch
      %91 = sbr.rel (0) target = $region29
    $region28: #{tpu_custom_call.1} parent=1 // pred_region
      %93 = dma.done [#allocation4], 32
    $region29: #{tpu_custom_call.1} parent=1 // pred_fallthru
      _
    %94 = vsyncpa [#allocation3], 1
    %95 = vsyncpa [#allocation6], 1
    %96 = vsyncpa [#allocation4], 1

</llo_original>
